<compile_context>
chip_gen: v6e
topology: v6e:2x2x1
jax: 0.10.0
libtpu: 0.0.40
codegen_flags: <defaults>
</compile_context>

<pallas_src>
import functools

import jax
import jax.numpy as jnp
from jax.experimental import pallas as pl
from jax.experimental.pallas import tpu as pltpu


def _round_up(x, m):
    return (x + m - 1) // m * m


def _vmem_capacity_bytes():
    try:
        return int(pltpu.get_tpu_info().vmem_capacity_bytes)
    except Exception:
        return 64 * 1024 * 1024  # conservative: v7x per-TensorCore VMEM


def _choose_tile_n(n, c, itemsize):
    # Sublane packing multiple for the native input dtype (8 f32 / 16 bf16).
    mult = max(8, 32 // max(1, itemsize))
    vmem_cap = _vmem_capacity_bytes()
    # Total per-step footprint: 2 double-buffered native-dtype logits buffers,
    # ~3 (tile, C) f32 temporaries (f32 cast, exp(x - m), where-select), plus
    # lane-padded (tile, 128) targets and output buffers.
    budget = min(vmem_cap // 2, 48 * 1024 * 1024)
    per_row = 2 * c * itemsize + 3 * c * 4 + 2 * 128 * 4 + 2 * 128 * 4
    max_rows = max(mult, budget // per_row)
    tile = min(512, max_rows, _round_up(n, mult))
    # Keep >= 2 (ideally >= 4) grid steps for megacore sharding on v7x's 2 TCs;
    # never shrink below 64 rows for it.
    if n >= 128:
        tile = min(tile, max(64, _round_up((n + 3) // 4, mult)))
    tile = max(mult, (tile // mult) * mult)
    if tile >= n:
        tile = n  # single block covering the full batch dim (any n allowed)
    return tile


def _focal_loss_kernel(logits_ref, targets_ref, out_ref, *,
                       alpha, gamma, n_rows, tile_n, reduce_mean, needs_mask):
    # (tile_n, C) logits in native dtype -> f32 for the math (required on v5e,
    # correct everywhere).
    x = logits_ref[...].astype(jnp.float32)
    t = targets_ref[...]                                   # (tile_n, 1) int32

    # Numerically stable log-sum-exp over the class axis (lanes).
    m = jnp.max(x, axis=-1, keepdims=True)                 # (tile_n, 1)
    lse = m + jnp.log(jnp.sum(jnp.exp(x - m), axis=-1, keepdims=True))

    # Gather logits[target] via a select (no f32 one-hot, no extra multiply).
    # (Out-of-range targets silently contribute tgt_logit = 0, i.e. ce = lse.)
    cls = jax.lax.broadcasted_iota(jnp.int32, x.shape, 1)
    tgt_logit = jnp.sum(jnp.where(cls == t, x, 0.0), axis=-1, keepdims=True)

    # Clamp so a target logit that rounds slightly above the row max cannot
    # push pt above 1.
    ce = jnp.maximum(lse - tgt_logit, 0.0)                 # (tile_n, 1)
    pt = jnp.exp(-ce)
    w = jnp.maximum(1.0 - pt, 0.0)

    # Small non-negative integer gamma -> plain VPU multiplies (no pow / EUP).
    if float(gamma) == int(gamma) and gamma >= 0:
        wg = jnp.ones_like(w)
        for _ in range(int(gamma)):
            wg = wg * w
    else:
        wg = jnp.power(w, gamma)

    f = alpha * wg * ce                                    # (tile_n, 1)

    if reduce_mean:
        # Per-tile partial sum; ragged-final-block garbage rows are removed
        # with a select (NaN-safe).  The mean is finished in the wrapper.
        if needs_mask:
            row = (pl.program_id(0) * tile_n
                   + jax.lax.broadcasted_iota(jnp.int32, (tile_n, 1), 0))
            f = jnp.where(row < n_rows, f, 0.0)
        out_ref[0] = jnp.sum(f, axis=0, keepdims=True)     # (1, 1)
    else:
        # Ragged final block: Pallas only writes back the in-bounds rows.
        out_ref[...] = f                                   # (tile_n, 1)


def focal_loss(inputs, targets, *, alpha=1.0, gamma=2.0, reduce=True,
               tile_n=None):
    """inputs: (N, C) logits (f32 or bf16); targets: (N,) int class indices."""
    n, c = inputs.shape
    itemsize = jnp.dtype(inputs.dtype).itemsize
    mult = max(8, 32 // max(1, itemsize))

    if tile_n is None:
        tile_n = _choose_tile_n(n, c, itemsize)
    else:
        tile_n = max(mult, (int(tile_n) // mult) * mult)
        tile_n = min(tile_n, n)
    num_tiles = (n + tile_n - 1) // tile_n
    needs_mask = (n % tile_n) != 0

    t = targets.astype(jnp.int32).reshape(n, 1)

    # alpha/gamma are fixed module hyperparameters -> baked in as constants.
    kernel = functools.partial(
        _focal_loss_kernel, alpha=float(alpha), gamma=float(gamma),
        n_rows=n, tile_n=tile_n, reduce_mean=bool(reduce),
        needs_mask=needs_mask)

    vmem_cap = _vmem_capacity_bytes()
    vmem_limit = max(32 * 1024 * 1024,
                     min((vmem_cap * 3) // 4, 64 * 1024 * 1024))

    logits_spec_kwargs = {}
    if tile_n <= 32 and num_tiles >= 4:
        # Tiny tiles (huge C): default double-buffering exposes DMA latency.
        logits_spec_kwargs["pipeline_mode"] = pl.Buffered(3)
    in_specs = [
        pl.BlockSpec((tile_n, c), lambda i: (i, 0), **logits_spec_kwargs),
        pl.BlockSpec((tile_n, 1), lambda i: (i, 0)),
    ]

    if reduce:
        out_shape = jax.ShapeDtypeStruct((num_tiles, 1, 1), jnp.float32)
        out_spec = pl.BlockSpec((1, 1, 1), lambda i: (i, 0, 0))
    else:
        out_shape = jax.ShapeDtypeStruct((n, 1), jnp.float32)
        out_spec = pl.BlockSpec((tile_n, 1), lambda i: (i, 0))

    out = pl.pallas_call(
        kernel,
        out_shape=out_shape,
        grid_spec=pltpu.PrefetchScalarGridSpec(
            num_scalar_prefetch=0,
            grid=(num_tiles,),
            in_specs=in_specs,
            out_specs=out_spec,
        ),
        compiler_params=pltpu.CompilerParams(
            dimension_semantics=("parallel",),
            vmem_limit_bytes=vmem_limit,
        ),
    )(inputs, t)

    if reduce:
        return jnp.sum(out) / n
    return out.reshape(n)


def _reference_focal_loss(inputs, targets, alpha=1.0, gamma=2.0, reduce=True):
    logp = jax.nn.log_softmax(inputs.astype(jnp.float32), axis=-1)
    ce = -jnp.take_along_axis(logp, targets[:, None].astype(jnp.int32),
                              axis=-1)[:, 0]
    pt = jnp.exp(-ce)
    f = alpha * (1.0 - pt) ** gamma * ce
    return jnp.mean(f) if reduce else f


if __name__ == "__main__":
    key = jax.random.PRNGKey(0)
    k_logits, k_targets = jax.random.split(key)

    N, C = 8, 32  # small multi-class classification head
    logits = jax.random.normal(k_logits, (N, C), dtype=jnp.float32)
    targets = jax.random.randint(k_targets, (N,), 0, C, dtype=jnp.int32)

    # Reduced (mean) path.
    out = jax.block_until_ready(
        focal_loss(logits, targets, alpha=1.0, gamma=2.0, reduce=True))
    ref = _reference_focal_loss(logits, targets, 1.0, 2.0, True)
    assert jnp.allclose(out, ref, atol=1e-5, rtol=1e-5), (out, ref)

    # Unreduced path.
    out_vec = jax.block_until_ready(focal_loss(logits, targets, reduce=False))
    ref_vec = _reference_focal_loss(logits, targets, reduce=False)
    assert jnp.allclose(out_vec, ref_vec, atol=1e-5, rtol=1e-5)

    # Ragged / multi-tile path (N not a multiple of the tile, several grid
    # steps, no wrapper-side padding).
    N2 = 20
    logits2 = jax.random.normal(jax.random.PRNGKey(1), (N2, C), dtype=jnp.float32)
    targets2 = jax.random.randint(jax.random.PRNGKey(2), (N2,), 0, C,
                                  dtype=jnp.int32)
    out2 = jax.block_until_ready(
        focal_loss(logits2, targets2, reduce=True, tile_n=8))
    ref2 = _reference_focal_loss(logits2, targets2, reduce=True)
    assert jnp.allclose(out2, ref2, atol=1e-5, rtol=1e-5), (out2, ref2)

    out2v = jax.block_until_ready(
        focal_loss(logits2, targets2, reduce=False, tile_n=8))
    ref2v = _reference_focal_loss(logits2, targets2, reduce=False)
    assert jnp.allclose(out2v, ref2v, atol=1e-5, rtol=1e-5)

    # bf16 logits path (native-dtype DMA, f32 math inside the kernel).
    logits_bf16 = logits.astype(jnp.bfloat16)
    out_bf = jax.block_until_ready(focal_loss(logits_bf16, targets, reduce=True))
    ref_bf = _reference_focal_loss(logits_bf16.astype(jnp.float32), targets,
                                   reduce=True)
    assert jnp.allclose(out_bf, ref_bf, atol=1e-3, rtol=1e-3), (out_bf, ref_bf)

    print("KERNEL_OK")
</pallas_src>

<mosaic_0001>
module attributes {stable_mosaic.version = 11 : i64} {
  func.func @_focal_loss_kernel(%arg0: i32, %arg1: memref<8x32xf32, #tpu.memory_space<vmem>>, %arg2: memref<8x1xi32, #tpu.memory_space<vmem>>, %arg3: memref<1x1x1xf32, #tpu.memory_space<vmem>>) attributes {dimension_semantics = [#tpu.dimension_semantics<parallel>], iteration_bounds = array<i64: 1>, scalar_prefetch = 0 : i64, scratch_operands = 0 : i64, tpu.core_type = #tpu.core_type<tc>, window_params = [{transform_indices = @transform_0, window_bounds = array<i64: 8, 32>}, {transform_indices = @transform_1, window_bounds = array<i64: 8, 1>}, {transform_indices = @transform_2, window_bounds = array<i64: 1, 1, 1>}]} {
    %c0 = arith.constant 0 : index
    %c0_0 = arith.constant 0 : index
    %0 = vector.load %arg1[%c0, %c0_0] : memref<8x32xf32, #tpu.memory_space<vmem>>, vector<8x32xf32>
    %c0_1 = arith.constant 0 : index
    %c0_2 = arith.constant 0 : index
    %1 = vector.load %arg2[%c0_1, %c0_2] : memref<8x1xi32, #tpu.memory_space<vmem>>, vector<8x1xi32>
    %cst = arith.constant dense<0xFF800000> : vector<8xf32>
    %2 = vector.multi_reduction <maximumf>, %0, %cst [1] : vector<8x32xf32> to vector<8xf32>
    %3 = vector.shape_cast %2 : vector<8xf32> to vector<8x1xf32>
    %4 = vector.broadcast %3 : vector<8x1xf32> to vector<8x32xf32>
    %5 = arith.subf %0, %4 : vector<8x32xf32>
    %6 = math.exp %5 : vector<8x32xf32>
    %cst_3 = arith.constant dense<0.000000e+00> : vector<8xf32>
    %7 = vector.multi_reduction <add>, %6, %cst_3 [1] : vector<8x32xf32> to vector<8xf32>
    %8 = vector.shape_cast %7 : vector<8xf32> to vector<8x1xf32>
    %9 = math.log %8 : vector<8x1xf32>
    %10 = arith.addf %3, %9 : vector<8x1xf32>
    %11 = tpu.iota {dimensions = array<i32: 1>} : vector<8x32xi32>
    %12 = vector.broadcast %1 : vector<8x1xi32> to vector<8x32xi32>
    %13 = arith.cmpi eq, %11, %12 : vector<8x32xi32>
    %cst_4 = arith.constant 0.000000e+00 : f32
    %14 = vector.broadcast %cst_4 : f32 to vector<8x32xf32>
    %15 = arith.select %13, %0, %14 : vector<8x32xi1>, vector<8x32xf32>
    %cst_5 = arith.constant dense<0.000000e+00> : vector<8xf32>
    %16 = vector.multi_reduction <add>, %15, %cst_5 [1] : vector<8x32xf32> to vector<8xf32>
    %17 = vector.shape_cast %16 : vector<8xf32> to vector<8x1xf32>
    %18 = arith.subf %10, %17 : vector<8x1xf32>
    %cst_6 = arith.constant 0.000000e+00 : f32
    %19 = vector.broadcast %cst_6 : f32 to vector<8x1xf32>
    %20 = arith.maximumf %18, %19 : vector<8x1xf32>
    %cst_7 = arith.constant 0.000000e+00 : f32
    %21 = vector.broadcast %cst_7 : f32 to vector<8x1xf32>
    %22 = arith.subf %21, %20 : vector<8x1xf32>
    %23 = math.exp %22 : vector<8x1xf32>
    %cst_8 = arith.constant 1.000000e+00 : f32
    %24 = vector.broadcast %cst_8 : f32 to vector<8x1xf32>
    %25 = arith.subf %24, %23 : vector<8x1xf32>
    %cst_9 = arith.constant 0.000000e+00 : f32
    %26 = vector.broadcast %cst_9 : f32 to vector<8x1xf32>
    %27 = arith.maximumf %25, %26 : vector<8x1xf32>
    %cst_10 = arith.constant 1.000000e+00 : f32
    %28 = vector.broadcast %cst_10 : f32 to vector<8x1xf32>
    %29 = arith.mulf %28, %27 : vector<8x1xf32>
    %30 = arith.mulf %29, %27 : vector<8x1xf32>
    %cst_11 = arith.constant 1.000000e+00 : f32
    %31 = vector.broadcast %cst_11 : f32 to vector<8x1xf32>
    %32 = arith.mulf %31, %30 : vector<8x1xf32>
    %33 = arith.mulf %32, %20 : vector<8x1xf32>
    %cst_12 = arith.constant dense<0.000000e+00> : vector<1xf32>
    %34 = vector.multi_reduction <add>, %33, %cst_12 [0] : vector<8x1xf32> to vector<1xf32>
    %35 = vector.shape_cast %34 : vector<1xf32> to vector<1x1xf32>
    %c0_13 = arith.constant 0 : index
    %c0_14 = arith.constant 0 : index
    %c0_15 = arith.constant 0 : index
    %36 = vector.load %arg3[%c0_13, %c0_14, %c0_15] : memref<1x1x1xf32, #tpu.memory_space<vmem>>, vector<1x1x1xf32>
    %37 = vector.shape_cast %36 : vector<1x1x1xf32> to vector<1x1xf32>
    %38 = vector.shape_cast %35 : vector<1x1xf32> to vector<1x1x1xf32>
    tpu.vector_store %arg3[%c0_13, %c0_14, %c0_15], %38 {strides = array<i32>} : memref<1x1x1xf32, #tpu.memory_space<vmem>>, vector<1x1x1xf32>,
    return
  }
  func.func @transform_0(%arg0: i32) -> (i32, i32) {
    %c0_i32 = arith.constant 0 : i32
    %c0_i32_0 = arith.constant 0 : i32
    return %arg0, %c0_i32 : i32, i32
  }
  func.func @transform_1(%arg0: i32) -> (i32, i32) {
    %c0_i32 = arith.constant 0 : i32
    %c0_i32_0 = arith.constant 0 : i32
    return %arg0, %c0_i32 : i32, i32
  }
  func.func @transform_2(%arg0: i32) -> (i32, i32, i32) {
    %c0_i32 = arith.constant 0 : i32
    %c0_i32_0 = arith.constant 0 : i32
    %c0_i32_1 = arith.constant 0 : i32
    return %arg0, %c0_i32, %c0_i32_0 : i32, i32, i32
  }
}

</mosaic_0001>

<llo_original>
// kernel: tpu_custom_call.1
$region0: #{tpu_custom_call.1}
  #allocation0 [shape = 'u32[]', space=smem, size = 0x4, offset = 0x4, fixed_abs, tag = 'smem constant byte address 0x4 - core index']
  #allocation1 [shape = 'u32[144,128]{1,0:T(1,128)}', space=vmem, size = 0x12000, scoped, tag = 'internal scratch']
  %s0 = inlined_call_operand.vmem [shape: f32[8,32], index: 0, kind: input, shape index: {}]
  %s1 = inlined_call_operand.vmem [shape: s32[8,1], index: 1, kind: input, shape index: {}]
  %s2 = inlined_call_operand.hbm [shape: f32[1,1,1], index: 2, kind: output, shape index: {}]
  %s3 = sld [smem:[#allocation0]]
  $region18: #{tpu_custom_call.1} parent=0
    _
  %s5 = ssub.s32 1, %s3
  %s6 = scalar_select 0, %s5, %s3
  $region1: #{tpu_custom_call.1} parent=0
    #allocation2 [shape = 'u8[512]{0}', space=vmem, size = 0x400, scoped, tag = 'output window, operand 0, single buffered']
    #allocation3 [shape = 's32[1]{0}', space=sflag, size = 0x4, scoped, tag = 'scoped memory for tpu_custom_call.1']
    %7 = vsyncpa [#allocation3], 0
    // Predicated region
    $region2: #{tpu_custom_call.1} parent=1 // pred_check
      _
    $region3: #{tpu_custom_call.1} parent=1 // pred_check_branch
      %9 = sbr.rel (0) target = $region5
    $region4: #{tpu_custom_call.1} parent=1 // pred_region
      _
    $region5: #{tpu_custom_call.1} parent=1 // pred_fallthru
      _
    // Predicated region
    $region6: #{tpu_custom_call.1} parent=1 // pred_check
      _
    $region7: #{tpu_custom_call.1} parent=1 // pred_check_branch
      %11 = sbr.rel (0) target = $region9
    $region8: #{tpu_custom_call.1} parent=1 // pred_region
      _
    $region9: #{tpu_custom_call.1} parent=1 // pred_fallthru
      _
    %v12 = vld [vmem:[%s0] sm:$0xff]
    %v13 = vld [vmem:[%s1] sm:$0xff]
    %vm14 = vcmask 261120
    %v15 = vsel %vm14, %v12, -inf
    %16 = vmax.xlane.f32.xlu0 %v15
    %v17 = vpop.xlane.xlu0 %16
    %v18 = vsub.f32 %v12, %v17
    %v19 = vmul.f32 %v18, 1.442695
    %v20 = vpow.pop %v19
    %v21 = vsel %vm14, %v20, 0.0
    %22 = vadd.xlane.f32.xlu0 %v21
    %v23 = vpop.xlane.xlu0 %22
    %v24 = vlog2.pop %v23
    %v25 = vmul.f32 %v24, 0.6931472
    %v26 = vadd.f32 %v17, %v25
    %v27 = vlaneseq
    %v28 = vand.u32 %v27, 127
    %29 = vset.pattern.permute.xlu0 0
    %30 = vperm.xlu0 %29, %v13
    %v31 = vpop.permute.xlu0 %30
    %vm32 = vcmp.eq.s32.totalorder %v28, %v31
    %v33 = vsel %vm32, %v12, 0.0
    %v34 = vsel %vm14, %v33, 0.0
    %35 = vadd.xlane.f32.xlu0 %v34
    %v36 = vpop.xlane.xlu0 %35
    %v37 = vsub.f32 %v26, %v36
    %v38 = vmax.f32 %v37, 0.0
    %v39 = vsub.f32 0.0, %v38
    %v40 = vmul.f32 %v39, 1.442695
    %v41 = vpow.pop %v40
    %v42 = vsub.f32 1.0, %v41
    %v43 = vmax.f32 %v42, 0.0
    %v44 = vmul.f32 %v43, %v43
    %v45 = vmul.f32 %v44, %v38
    %v46 = vrot.slane %v45, 4
    %v47 = vadd.f32 %v45, %v46
    %v48 = vrot.slane %v47, 2
    %v49 = vadd.f32 %v47, %v48
    %v50 = vrot.slane %v49, 1
    %v51 = vadd.f32 %v49, %v50
    %vm52 = vcmask 0
    %53 = vst.msk [vmem:[#allocation2] sm:$0x1] %vm52, %v51
    // Predicated region
    $region10: #{tpu_custom_call.1} parent=1 // pred_check
      _
    $region11: #{tpu_custom_call.1} parent=1 // pred_check_branch
      %55 = sbr.rel (0) target = $region13
    $region12: #{tpu_custom_call.1} parent=1 // pred_region
      %s57 = ssub.s32 16, 16
      %58 = vsyncadd [#allocation3], %s57
      %s60 = sshll.u32 [#allocation2], 4
      %s61 = int_to_ptr.vmem [resolvable:$true] %s60
      %63 = dma.vmem_to_hbm [thread:$0]  %s61, 16, %s2, [#allocation3]
    $region13: #{tpu_custom_call.1} parent=1 // pred_fallthru
      _
    // Predicated region
    $region14: #{tpu_custom_call.1} parent=1 // pred_check
      _
    $region15: #{tpu_custom_call.1} parent=1 // pred_check_branch
      %65 = sbr.rel (0) target = $region17
    $region16: #{tpu_custom_call.1} parent=1 // pred_region
      %66 = dma.done [#allocation3], 16
    $region17: #{tpu_custom_call.1} parent=1 // pred_fallthru
      _
    %67 = vsyncpa [#allocation3], 1

</llo_original>
